<compile_context>
chip_gen: v7x
topology: tpu7x:2x2x1
jax: 0.10.0
libtpu: 0.0.40
codegen_flags: <defaults>
</compile_context>

<pallas_src>
import functools

import jax
import jax.numpy as jnp
from jax.experimental import pallas as pl
from jax.experimental.pallas import tpu as pltpu


# ----------------------------------------------------------------------------
# helpers
# ----------------------------------------------------------------------------
def _round_up(x, m):
    return ((x + m - 1) // m) * m


def _largest_aligned_divisor(total, cap, unit):
    """Largest multiple of `unit` that divides `total` and is <= cap.

    `total` must itself be a multiple of `unit` (so `unit` always works)."""
    t = min(cap, total)
    t -= t % unit
    while t > unit:
        if total % t == 0:
            return t
        t -= unit
    return unit


@functools.lru_cache(maxsize=1)
def _vmem_budget_bytes():
    """Per-TensorCore VMEM capacity with ~25% headroom for compiler scratch."""
    cap = 64 << 20  # conservative fallback (v7x per-TC capacity)
    try:
        cap = int(pltpu.get_tpu_info().vmem_capacity_bytes)
    except Exception:
        pass
    return int(cap * 3 // 4)


# ----------------------------------------------------------------------------
# kernels
# ----------------------------------------------------------------------------
def _linear_ws_kernel(x_ref, w_ref, b_ref, o_ref):
    # Weight-stationary: x_ref (tm, Kp), w_ref (Kp, tn), b_ref (1, tn) f32.
    # Weight block index depends only on the outer (N) grid axis, so it is
    # DMA'd once per column block and reused across all M tiles.
    o_ref[...] = (
        jnp.dot(x_ref[...], w_ref[...], preferred_element_type=jnp.float32)
        + b_ref[...]
    ).astype(o_ref.dtype)


def _linear_ksplit_kernel(x_ref, w_ref, b_ref, o_ref, acc_ref):
    # Fallback for very large K: stream (tk, tn) weight blocks, f32 accumulator.
    k = pl.program_id(2)

    @pl.when(k == 0)
    def _():
        acc_ref[...] = jnp.zeros_like(acc_ref)

    acc_ref[...] += jnp.dot(
        x_ref[...], w_ref[...], preferred_element_type=jnp.float32
    )

    @pl.when(k == pl.num_programs(2) - 1)
    def _():
        o_ref[...] = (acc_ref[...] + b_ref[...]).astype(o_ref.dtype)


# ----------------------------------------------------------------------------
# tiling plan + jitted builders (cached per static shape/dtype/tiling)
# ----------------------------------------------------------------------------
def _plan(M, K, N, compute_isize, out_isize):
    Kp = _round_up(K, 128)
    Np = _round_up(N, 128)
    Mp8 = _round_up(M, 8)
    budget = _vmem_budget_bytes()

    tn = _largest_aligned_divisor(Np, 512, 128)
    tm = min(512, Mp8)
    Mp = _round_up(M, tm)

    # v7x megacore: guarantee >=2 blocks along a "parallel" axis when possible.
    if Mp // tm == 1 and Np // tn == 1 and Np >= 256:
        tn = _largest_aligned_divisor(Np, Np // 2, 128)

    def ws_bytes(tm_, tn_):
        return (2 * tm_ * Kp * compute_isize      # x slab (double-buffered)
                + 2 * Kp * tn_ * compute_isize    # weight slab (double-buffered)
                + 2 * tm_ * tn_ * out_isize       # output tile (double-buffered)
                + 2 * tn_ * 4)                    # bias tile

    # Preferred: weight-stationary (no K axis); shrink tiles until it fits.
    for tm_try, tn_try in ((tm, tn), (256, tn), (256, 256), (128, 256), (128, 128)):
        tm_c = max(8, min(tm_try, Mp8) - (min(tm_try, Mp8) % 8))
        tn_c = _largest_aligned_divisor(Np, tn_try, 128)
        if ws_bytes(tm_c, tn_c) <= budget:
            return dict(kind="ws", tm=tm_c, tn=tn_c, tk=Kp,
                        Mp=_round_up(M, tm_c), Kp=Kp, Np=Np, vmem=budget)

    # Fallback: K-split reduction with f32 VMEM accumulator.
    tm_c = max(8, min(512, Mp8) - (min(512, Mp8) % 8))
    tn_c = _largest_aligned_divisor(Np, 512, 128)
    tk_c = _largest_aligned_divisor(Kp, 1024, 128)
    return dict(kind="ksplit", tm=tm_c, tn=tn_c, tk=tk_c,
                Mp=_round_up(M, tm_c), Kp=Kp, Np=Np, vmem=budget)


@functools.lru_cache(maxsize=None)
def _build_linear(M, K, N, compute_dtype_name, out_dtype_name,
                  kind, tm, tn, tk, Mp, Kp, Np, vmem):
    compute_dtype = jnp.dtype(compute_dtype_name)
    out_dtype = jnp.dtype(out_dtype_name)

    if kind == "ws":
        grid = (Np // tn, Mp // tm)  # weight index (j) outermost -> stationary
        in_specs = [
            pl.BlockSpec((tm, Kp), lambda j, i: (i, 0)),   # activations
            pl.BlockSpec((Kp, tn), lambda j, i: (0, j)),   # weight (resident over i)
            pl.BlockSpec((1, tn), lambda j, i: (0, j)),    # bias
        ]
        out_specs = pl.BlockSpec((tm, tn), lambda j, i: (i, j))
        scratch = []
        kernel = _linear_ws_kernel
        dims = ("parallel", "parallel")
    else:
        grid = (Mp // tm, Np // tn, Kp // tk)
        in_specs = [
            pl.BlockSpec((tm, tk), lambda i, j, k: (i, k)),
            pl.BlockSpec((tk, tn), lambda i, j, k: (k, j)),
            pl.BlockSpec((1, tn), lambda i, j, k: (0, j)),
        ]
        out_specs = pl.BlockSpec((tm, tn), lambda i, j, k: (i, j))
        scratch = [pltpu.VMEM((tm, tn), jnp.float32)]
        kernel = _linear_ksplit_kernel
        dims = ("parallel", "parallel", "arbitrary")

    call = pl.pallas_call(
        kernel,
        out_shape=jax.ShapeDtypeStruct((Mp, Np), out_dtype),
        grid_spec=pltpu.PrefetchScalarGridSpec(
            num_scalar_prefetch=0,
            grid=grid,
            in_specs=in_specs,
            out_specs=out_specs,
            scratch_shapes=scratch,
        ),
        compiler_params=pltpu.CompilerParams(
            dimension_semantics=dims,
            vmem_limit_bytes=int(vmem),
        ),
    )

    def fn(x2d, w_p, b_p):
        x_c = x2d.astype(compute_dtype)
        if (Mp, Kp) != (M, K):          # skip the pad copy for aligned shapes
            x_c = jnp.pad(x_c, ((0, Mp - M), (0, Kp - K)))
        out = call(x_c, w_p, b_p)
        if (Mp, Np) != (M, N):
            out = out[:M, :N]
        return out

    return jax.jit(fn)


def pallas_linear_prepacked(x2d, w_p, b_p, M, K, N, compute_dtype, out_dtype):
    """out = x2d @ W + b with W/b pre-padded & pre-cast (shapes (Kp, Np), (1, Np))."""
    plan = _plan(M, K, N,
                 jnp.dtype(compute_dtype).itemsize,
                 jnp.dtype(out_dtype).itemsize)
    fn = _build_linear(M, K, N,
                       jnp.dtype(compute_dtype).name, jnp.dtype(out_dtype).name,
                       plan["kind"], plan["tm"], plan["tn"], plan["tk"],
                       plan["Mp"], plan["Kp"], plan["Np"], plan["vmem"])
    return fn(x2d, w_p, b_p)


# ----------------------------------------------------------------------------
# ModuleDetector
# ----------------------------------------------------------------------------
class ModuleDetectorPallas:
    """JAX/Pallas re-implementation of ModuleDetector wrapping a Linear model."""

    def __init__(self, weight, bias, mode="input", hidden_loc=0,
                 compute_dtype=jnp.bfloat16, out_dtype=None):
        # weight: [H_in, H_out] (stored transposed, ready for x @ W), bias: [H_out]
        self.mode = mode
        self.hidden_loc = hidden_loc
        self.hidden_button = False
        self.tmp_hidden = None
        self.memory = []
        self.memory_mask = None

        K, N = weight.shape
        self.K, self.N = K, N
        self.compute_dtype = jnp.dtype(compute_dtype)   # precision knob
        self.out_dtype = jnp.dtype(out_dtype) if out_dtype is not None else None

        # Pre-pack the STATIC parameters once: pad to (8,128)-aligned slabs and
        # cast to the MXU compute dtype.  Avoids a K*N HBM round trip per call.
        Kp = _round_up(K, 128)
        Np = _round_up(N, 128)
        self.w_p = jnp.zeros((Kp, Np), self.compute_dtype).at[:K, :N].set(
            weight.astype(self.compute_dtype))
        self.b_p = jnp.zeros((1, Np), jnp.float32).at[0, :N].set(
            bias.astype(jnp.float32))

    def set_hidden_loc(self, hl):
        self.hidden_loc = hl

    def turn_on_hidden(self):
        self.hidden_button = True

    def turn_off_hidden(self):
        self.hidden_button = False

    def get_hidden(self):
        return self.tmp_hidden

    def __call__(self, hidden_states):
        # hidden_states: [B, S, H]
        B, S, H = hidden_states.shape
        assert H == self.K, "hidden size must match the wrapped Linear's in-features"
        out_dtype = self.out_dtype if self.out_dtype is not None else hidden_states.dtype

        x2d = hidden_states.reshape(B * S, H)
        out2d = pallas_linear_prepacked(
            x2d, self.w_p, self.b_p, B * S, self.K, self.N,
            self.compute_dtype, out_dtype)
        output = out2d.reshape(B, S, self.N)

        # Hidden capture — matches the PyTorch slice/reshape semantics (glue).
        # TODO(synk): copy.deepcopy in the reference is a host-side detach;
        # JAX arrays are immutable so a plain reference is equivalent.
        m_tmp = hidden_states if self.mode == "input" else output
        hidden_size = m_tmp.shape[-1]
        if self.hidden_button:
            if self.hidden_loc == "bart_seq":
                self.tmp_hidden = m_tmp.reshape(-1, hidden_size)
            else:
                self.tmp_hidden = m_tmp[:, self.hidden_loc].reshape(
                    -1, hidden_size)
        return output


# ----------------------------------------------------------------------------
# demo / self-check
# ----------------------------------------------------------------------------
if __name__ == "__main__":
    key = jax.random.PRNGKey(0)
    kx, kw, kb = jax.random.split(key, 3)

    B, S, H = 2, 8, 32               # batch=2, seq=8, hidden=32
    x = jax.random.normal(kx, (B, S, H), dtype=jnp.float32)
    # Deterministic parameter init for the wrapped Linear(H, H):
    w = jax.random.normal(kw, (H, H), dtype=jnp.float32) * (1.0 / jnp.sqrt(H))
    b = jax.random.normal(kb, (H,), dtype=jnp.float32) * 0.01

    det = ModuleDetectorPallas(w, b, mode="input", hidden_loc=0)
    det.turn_on_hidden()

    out = det(x)
    out = jax.block_until_ready(out)

    # Reference check against plain JAX (bf16-operand tolerance).
    ref = x.reshape(-1, H) @ w + b
    assert out.shape == (B, S, H)
    assert jnp.allclose(out.reshape(-1, H), ref, atol=5e-2, rtol=5e-2), (
        "kernel output mismatch")

    # Hidden capture check: m_tmp[:, 0].reshape(-1, H) — exact (no compute).
    hid = jax.block_until_ready(det.get_hidden())
    assert hid.shape == (B, H)
    assert jnp.allclose(hid, x[:, 0].reshape(-1, H))

    # Second call exercises the cached jitted path (no re-pack, no re-trace).
    out2 = jax.block_until_ready(det(x))
    assert jnp.allclose(out2, out)

    print("KERNEL_OK")
</pallas_src>

<mosaic_0001>
module attributes {stable_mosaic.version = 11 : i64} {
  func.func @_linear_ws_kernel(%arg0: i32, %arg1: i32, %arg2: memref<16x128xbf16, #tpu.memory_space<vmem>>, %arg3: memref<128x128xbf16, #tpu.memory_space<vmem>>, %arg4: memref<1x128xf32, #tpu.memory_space<vmem>>, %arg5: memref<16x128xf32, #tpu.memory_space<vmem>>) attributes {dimension_semantics = [#tpu.dimension_semantics<parallel>, #tpu.dimension_semantics<parallel>], iteration_bounds = array<i64: 1, 1>, scalar_prefetch = 0 : i64, scratch_operands = 0 : i64, tpu.core_type = #tpu.core_type<tc>, window_params = [{transform_indices = @transform_0, window_bounds = array<i64: 16, 128>}, {transform_indices = @transform_1, window_bounds = array<i64: 128, 128>}, {transform_indices = @transform_2, window_bounds = array<i64: 1, 128>}, {transform_indices = @transform_3, window_bounds = array<i64: 16, 128>}]} {
    %c0 = arith.constant 0 : index
    %c0_0 = arith.constant 0 : index
    %0 = vector.load %arg2[%c0, %c0_0] : memref<16x128xbf16, #tpu.memory_space<vmem>>, vector<16x128xbf16>
    %c0_1 = arith.constant 0 : index
    %c0_2 = arith.constant 0 : index
    %1 = vector.load %arg3[%c0_1, %c0_2] : memref<128x128xbf16, #tpu.memory_space<vmem>>, vector<128x128xbf16>
    %cst = arith.constant dense<0.000000e+00> : vector<16x128xf32>
    %2 = tpu.matmul %0, %1, %cst {dimension_numbers = #tpu.dot_dimension_numbers<[1], [0], [0], [1], [0, 0, 1, 1], [], []>} : vector<16x128xbf16>, vector<128x128xbf16>, vector<16x128xf32> -> vector<16x128xf32>
    %c0_3 = arith.constant 0 : index
    %c0_4 = arith.constant 0 : index
    %3 = vector.load %arg4[%c0_3, %c0_4] : memref<1x128xf32, #tpu.memory_space<vmem>>, vector<1x128xf32>
    %4 = vector.broadcast %3 : vector<1x128xf32> to vector<16x128xf32>
    %5 = arith.addf %2, %4 : vector<16x128xf32>
    %c0_5 = arith.constant 0 : index
    %c0_6 = arith.constant 0 : index
    %6 = vector.load %arg5[%c0_5, %c0_6] : memref<16x128xf32, #tpu.memory_space<vmem>>, vector<16x128xf32>
    tpu.vector_store %arg5[%c0_5, %c0_6], %5 {strides = array<i32>} : memref<16x128xf32, #tpu.memory_space<vmem>>, vector<16x128xf32>,
    return
  }
  func.func @transform_0(%arg0: i32, %arg1: i32) -> (i32, i32) {
    %c0_i32 = arith.constant 0 : i32
    %c0_i32_0 = arith.constant 0 : i32
    return %arg1, %c0_i32 : i32, i32
  }
  func.func @transform_1(%arg0: i32, %arg1: i32) -> (i32, i32) {
    %c0_i32 = arith.constant 0 : i32
    %c0_i32_0 = arith.constant 0 : i32
    return %c0_i32, %arg0 : i32, i32
  }
  func.func @transform_2(%arg0: i32, %arg1: i32) -> (i32, i32) {
    %c0_i32 = arith.constant 0 : i32
    %c0_i32_0 = arith.constant 0 : i32
    return %c0_i32, %arg0 : i32, i32
  }
  func.func @transform_3(%arg0: i32, %arg1: i32) -> (i32, i32) {
    %c0_i32 = arith.constant 0 : i32
    return %arg1, %arg0 : i32, i32
  }
}

</mosaic_0001>

<llo_original>
// kernel: fn.1
$region0: #{fn.1}
  #allocation0 [shape = 'u32[]', space=smem, size = 0x4, offset = 0x4, fixed_abs, tag = 'smem constant byte address 0x4 - core index']
  #allocation1 [shape = 'u32[144,128]{1,0:T(1,128)}', space=vmem, size = 0x12000, scoped, tag = 'internal scratch']
  %s0 = inlined_call_operand.vmem [shape: bf16[16,128], index: 0, kind: input, shape index: {}]
  %s1 = inlined_call_operand.hbm [shape: bf16[128,128], index: 1, kind: input, shape index: {}]
  %s2 = inlined_call_operand.vmem [shape: f32[1,128], index: 2, kind: input, shape index: {}]
  %s3 = inlined_call_operand.hbm [shape: f32[16,128], index: 3, kind: output, shape index: {}]
  %s4 = sld [smem:[#allocation0]]
  $region26: #{fn.1} parent=0
    _
  %s6 = ssub.s32 1, %s4
  %s7 = scalar_select 0, %s6, %s4
  $region1: #{fn.1} parent=0
    #allocation2 [shape = 'u8[32768]{0}', space=vmem, size = 0x8000, scoped, tag = 'input window, operand 1, single buffered']
    #allocation3 [shape = 's32[1]{0}', space=sflag, size = 0x4, scoped, tag = 'scoped memory for fn.1']
    #allocation4 [shape = 's32[1]{0}', space=sflag, size = 0x4, scoped, tag = 'scoped memory for fn.1']
    #allocation5 [shape = 'u8[8192]{0}', space=vmem, size = 0x2000, scoped, tag = 'output window, operand 0, single buffered']
    %8 = vsyncpa [#allocation3], 0
    %9 = vsyncpa [#allocation4], 0
    // Predicated region
    $region2: #{fn.1} parent=1 // pred_check
      _
    $region3: #{fn.1} parent=1 // pred_check_branch
      %11 = sbr.rel (0) target = $region5
    $region4: #{fn.1} parent=1 // pred_region
      _
    $region5: #{fn.1} parent=1 // pred_fallthru
      _
    // Predicated region
    $region6: #{fn.1} parent=1 // pred_check
      _
    $region7: #{fn.1} parent=1 // pred_check_branch
      %13 = sbr.rel (0) target = $region9
    $region8: #{fn.1} parent=1 // pred_region
      %s15 = ssub.s32 1024, 1024
      %16 = vsyncadd [#allocation3], %s15
      %s17 = sshll.u32 [#allocation2], 4
      %s18 = int_to_ptr.vmem [resolvable:$true] %s17
      %23 = dma.hbm_to_vmem [thread:$0]  %s1, 1024, %s18, [#allocation3], 64, 64, 4
    $region9: #{fn.1} parent=1 // pred_fallthru
      _
    // Predicated region
    $region10: #{fn.1} parent=1 // pred_check
      _
    $region11: #{fn.1} parent=1 // pred_check_branch
      %25 = sbr.rel (0) target = $region13
    $region12: #{fn.1} parent=1 // pred_region
      _
    $region13: #{fn.1} parent=1 // pred_fallthru
      _
    // Predicated region
    $region14: #{fn.1} parent=1 // pred_check
      _
    $region15: #{fn.1} parent=1 // pred_check_branch
      %27 = sbr.rel (0) target = $region17
    $region16: #{fn.1} parent=1 // pred_region
      %28 = dma.done [#allocation3], 1024
    $region17: #{fn.1} parent=1 // pred_fallthru
      _
    %v30 = vld [vmem:[%s0] sm:$0xf]
    %v31 = vld [vmem:[%s0 + $0x4] sm:$0xf]
    %v32 = vld [vmem:[#allocation2] sm:$0xf]
    %v33 = vld [vmem:[#allocation2 + $0x4] sm:$0xf]
    %v34 = vld [vmem:[#allocation2 + $0x8] sm:$0xf]
    %v35 = vld [vmem:[#allocation2 + $0xc] sm:$0xf]
    %v36 = vld [vmem:[#allocation2 + $0x10] sm:$0xf]
    %v37 = vld [vmem:[#allocation2 + $0x14] sm:$0xf]
    %v38 = vld [vmem:[#allocation2 + $0x18] sm:$0xf]
    %v39 = vld [vmem:[#allocation2 + $0x1c] sm:$0xf]
    %v40 = vld [vmem:[#allocation2 + $0x20] sm:$0xf]
    %v41 = vld [vmem:[#allocation2 + $0x24] sm:$0xf]
    %v42 = vld [vmem:[#allocation2 + $0x28] sm:$0xf]
    %v43 = vld [vmem:[#allocation2 + $0x2c] sm:$0xf]
    %v44 = vld [vmem:[#allocation2 + $0x30] sm:$0xf]
    %v45 = vld [vmem:[#allocation2 + $0x34] sm:$0xf]
    %v46 = vld [vmem:[#allocation2 + $0x38] sm:$0xf]
    %v47 = vld [vmem:[#allocation2 + $0x3c] sm:$0xf]
    %v48 = vld [vmem:[%s2] sm:$0x1]
    %v50 = vlaneseq
    %v51 = vshrl.u32 %v50, 7
    %v52 = vsub.s32 0, %v51
    %v53 = vrot.slane %v48, %v52
    %v57 = vunpack.c.l.b16 %v30
    %v58 = vunpack.c.l.b16 %v31
    %v59 = vpack.c.b16 %v58, %v57
    %v77 = vunpack.c.l.b16 %v32
    %v78 = vunpack.c.l.b16 %v33
    %v79 = vunpack.c.l.b16 %v34
    %v80 = vunpack.c.l.b16 %v35
    %v81 = vunpack.c.l.b16 %v36
    %v82 = vunpack.c.l.b16 %v37
    %v83 = vunpack.c.l.b16 %v38
    %v84 = vunpack.c.l.b16 %v39
    %v85 = vunpack.c.l.b16 %v40
    %v86 = vunpack.c.l.b16 %v41
    %v87 = vunpack.c.l.b16 %v42
    %v88 = vunpack.c.l.b16 %v43
    %v89 = vunpack.c.l.b16 %v44
    %v90 = vunpack.c.l.b16 %v45
    %v91 = vunpack.c.l.b16 %v46
    %v92 = vunpack.c.l.b16 %v47
    %v93 = vpack.c.b16 %v78, %v77
    %v94 = vpack.c.b16 %v80, %v79
    %v95 = vpack.c.b16 %v82, %v81
    %v96 = vpack.c.b16 %v84, %v83
    %v97 = vpack.c.b16 %v86, %v85
    %v98 = vpack.c.b16 %v88, %v87
    %v99 = vpack.c.b16 %v90, %v89
    %v100 = vpack.c.b16 %v92, %v91
    %109 = vmatprep.subr.bf16.mxu0 0
    %110 = vmatpush1.bf16.msra.mxu0 %v93
    %111 = vmatprep.subr.bf16.mxu0 0
    %112 = vmatpush1.bf16.msra.mxu0 %v94
    %113 = vmatprep.subr.bf16.mxu0 0
    %114 = vmatpush1.bf16.msra.mxu0 %v95
    %115 = vmatprep.subr.bf16.mxu0 0
    %116 = vmatpush1.bf16.msra.mxu0 %v96
    %117 = vmatprep.subr.bf16.mxu0 0
    %118 = vmatpush1.bf16.msra.mxu0 %v97
    %119 = vmatprep.subr.bf16.mxu0 0
    %120 = vmatpush1.bf16.msra.mxu0 %v98
    %121 = vmatprep.subr.bf16.mxu0 0
    %122 = vmatpush1.bf16.msra.mxu0 %v99
    %123 = vmatprep.subr.bf16.mxu0 0
    %124 = vmatpush1.bf16.msra.mxu0 %v100
    %125 = vmatprep.subr.bf16.mxu0 0
    %126 = vmatpush1.bf16.msra.mxu0 0
    %127 = vmatprep.subr.bf16.mxu0 0
    %128 = vmatpush1.bf16.msra.mxu0 0
    %129 = vmatprep.subr.bf16.mxu0 0
    %130 = vmatpush1.bf16.msra.mxu0 0
    %131 = vmatprep.subr.bf16.mxu0 0
    %132 = vmatpush1.bf16.msra.mxu0 0
    %133 = vmatprep.subr.bf16.mxu0 0
    %134 = vmatpush1.bf16.msra.mxu0 0
    %135 = vmatprep.subr.bf16.mxu0 0
    %136 = vmatpush1.bf16.msra.mxu0 0
    %137 = vmatprep.subr.bf16.mxu0 0
    %138 = vmatpush1.bf16.msra.mxu0 0
    %139 = vmatprep.subr.bf16.mxu0 0
    %140 = vmatpush1.bf16.msra.mxu0 0
    %141 = vmatprep.mubr.bf16.mxu0 0
    %142 = vmatmul.mubr.bf16.gmra.mrb[0].mxu0 %v59
    %v143 = vpop.f32.mrb[0].mxu0
    %v144 = vadd.f32 %v53, %v143
    %v145 = vpop.f32.mrb[0].mxu0
    %v146 = vpop.f32.mrb[0].mxu0
    %v147 = vadd.f32 %v53, %v146
    %v148 = vpop.f32.mrb[0].mxu0
    %149 = vdwg.mxu0
    %150 = vst [vmem:[#allocation5] sm:$0xff] %v144
    %151 = vst [vmem:[#allocation5 + $0x8] sm:$0xff] %v147
    // Predicated region
    $region18: #{fn.1} parent=1 // pred_check
      _
    $region19: #{fn.1} parent=1 // pred_check_branch
      %153 = sbr.rel (0) target = $region21
    $region20: #{fn.1} parent=1 // pred_region
      %s155 = ssub.s32 256, 256
      %156 = vsyncadd [#allocation4], %s155
      %s157 = sshll.u32 [#allocation5], 4
      %s158 = int_to_ptr.vmem [resolvable:$true] %s157
      %163 = dma.vmem_to_hbm [thread:$0]  %s158, 256, %s3, [#allocation4], 128, 128, 8
    $region21: #{fn.1} parent=1 // pred_fallthru
      _
    // Predicated region
    $region22: #{fn.1} parent=1 // pred_check
      _
    $region23: #{fn.1} parent=1 // pred_check_branch
      %165 = sbr.rel (0) target = $region25
    $region24: #{fn.1} parent=1 // pred_region
      %166 = dma.done [#allocation4], 256
    $region25: #{fn.1} parent=1 // pred_fallthru
      _
    %167 = vsyncpa [#allocation3], 1
    %168 = vsyncpa [#allocation4], 1

</llo_original>
